<compile_context>
chip_gen: v7x
topology: tpu7x:2x2x1
jax: 0.10.0
libtpu: 0.0.40
codegen_flags: <defaults>
</compile_context>

<pallas_src>
import math

import jax
import jax.numpy as jnp
from jax.experimental import pallas as pl
from jax.experimental.pallas import tpu as pltpu


_F32 = jnp.float32


def _ceil_div(a, b):
    return -(-a // b)


def _choose_chunk_rows(rows, width, target_bytes=256 * 1024):
    """Rows per streamed chunk inside the single-pass kernel (~256 KiB of f32)."""
    if rows <= 8:
        return rows
    per_row = width * 4
    cr = (target_bytes // per_row) // 8 * 8
    return int(max(8, min(rows, cr)))


def _pick_tile_rows(rows, max_rows):
    """Row-tile size: multiple of 8, <= max_rows, preferring divisors of `rows`."""
    if rows <= 8:
        return rows
    max_rows = int(max(8, min(rows, (int(max_rows) // 8) * 8)))
    best = None
    for tr in range(max_rows, 7, -8):
        if rows % tr == 0:
            best = tr
            break
    if best is not None and 2 * best >= max_rows:
        return best
    return max_rows           # trailing partial tile handled (masked) in-kernel


def _compiler_params(dim_semantics, working_bytes):
    # Raise the scoped-VMEM limit only when the pipeline actually needs it; keep
    # ~25% headroom and stay under v7x's 64 MiB physical VMEM (v5e/v6e have 128).
    need = int(working_bytes) * 5 // 4 + (1 << 20)
    kwargs = {}
    if need > (16 << 20):
        kwargs["vmem_limit_bytes"] = int(min(need, 48 << 20))
    return pltpu.CompilerParams(dimension_semantics=dim_semantics, **kwargs)


# --------------------------------------------------------------------------- kernels


def _make_single_pass_kernel(R, L, inv_n, eps, chunk_rows, out_dtype):
    """Whole per-batch slab resident in VMEM; mean computed in-kernel, streamed."""
    n_full = R // chunk_rows
    rem = R - n_full * chunk_rows

    def _sums(xr_ref, xi_ref, r0, rows):
        xr = xr_ref[0, pl.ds(r0, rows), :].astype(_F32)
        xi = xi_ref[0, pl.ds(r0, rows), :].astype(_F32)
        return jnp.sum(xr), jnp.sum(xi)

    def _normalize(xr_ref, xi_ref, g, b, yr_ref, yi_ref, r0, rows, mr, mi):
        xr = xr_ref[0, pl.ds(r0, rows), :].astype(_F32)
        xi = xi_ref[0, pl.ds(r0, rows), :].astype(_F32)
        cr = xr - mr
        ci = xi - mi
        inv_std = jax.lax.rsqrt(cr * cr + ci * ci + eps)        # EUP, elementwise
        yr_ref[0, pl.ds(r0, rows), :] = (g * (cr * inv_std) + b).astype(out_dtype)
        yi_ref[0, pl.ds(r0, rows), :] = (g * (ci * inv_std)).astype(out_dtype)

    def kernel(xr_ref, xi_ref, gb_ref, yr_ref, yi_ref):
        # Pass A: streamed complex mean (no full-slab value kept live across the reduce).
        def sum_body(c, carry):
            sr, si = carry
            r0 = pl.multiple_of(c * chunk_rows, chunk_rows)
            dr, di = _sums(xr_ref, xi_ref, r0, chunk_rows)
            return sr + dr, si + di

        sr, si = jax.lax.fori_loop(0, n_full, sum_body,
                                   (jnp.float32(0.0), jnp.float32(0.0)))
        if rem:
            dr, di = _sums(xr_ref, xi_ref, n_full * chunk_rows, rem)
            sr = sr + dr
            si = si + di
        mr = sr * inv_n
        mi = si * inv_n

        g = gb_ref[0:1, :]
        b = gb_ref[1:2, :]

        # Pass B: streamed normalize + affine (VMEM reads, HBM untouched).
        def norm_body(c, carry):
            r0 = pl.multiple_of(c * chunk_rows, chunk_rows)
            _normalize(xr_ref, xi_ref, g, b, yr_ref, yi_ref, r0, chunk_rows, mr, mi)
            return carry

        jax.lax.fori_loop(0, n_full, norm_body, 0)
        if rem:
            _normalize(xr_ref, xi_ref, g, b, yr_ref, yi_ref,
                       n_full * chunk_rows, rem, mr, mi)

    return kernel


def _make_two_phase_kernel(R, TR, L, inv_n, eps, out_dtype):
    """Large slabs, B >= 2: phase 0 accumulates the complex sum (SMEM scratch),
    phase 1 normalizes. One pallas_call, no XLA mean prepass."""
    partial = (R % TR) != 0

    def kernel(xr_ref, xi_ref, gb_ref, yr_ref, yi_ref, sum_ref):
        p = pl.program_id(1)
        t = pl.program_id(2)

        @pl.when(p == 0)
        def _():
            xr = xr_ref[0].astype(_F32)
            xi = xi_ref[0].astype(_F32)
            if partial:   # trailing tile: mask rows past the array extent
                valid = jnp.minimum(TR, R - t * TR)
                row = jax.lax.broadcasted_iota(jnp.int32, (TR, L), 0)
                keep = row < valid
                sr = jnp.sum(jnp.where(keep, xr, 0.0))
                si = jnp.sum(jnp.where(keep, xi, 0.0))
            else:
                sr = jnp.sum(xr)
                si = jnp.sum(xi)
            init = t == 0
            sum_ref[0] = jnp.where(init, sr, sum_ref[0] + sr)
            sum_ref[1] = jnp.where(init, si, sum_ref[1] + si)

        @pl.when(p == 1)
        def _():
            mr = sum_ref[0] * inv_n
            mi = sum_ref[1] * inv_n
            xr = xr_ref[0].astype(_F32)
            xi = xi_ref[0].astype(_F32)
            cr = xr - mr
            ci = xi - mi
            inv_std = jax.lax.rsqrt(cr * cr + ci * ci + eps)
            g = gb_ref[0:1, :]
            b = gb_ref[1:2, :]
            yr_ref[0] = (g * (cr * inv_std) + b).astype(out_dtype)
            yi_ref[0] = (g * (ci * inv_std)).astype(out_dtype)

    return kernel


def _make_tiled_mean_kernel(eps, out_dtype):
    """Large slabs, B == 1: means precomputed in the wrapper (flat SMEM array),
    fully parallel (B, tiles) grid so both v7x TensorCores get work."""

    def kernel(mean_ref, xr_ref, xi_ref, gb_ref, yr_ref, yi_ref):
        b = pl.program_id(0)
        mr = mean_ref[2 * b]
        mi = mean_ref[2 * b + 1]
        xr = xr_ref[0].astype(_F32)
        xi = xi_ref[0].astype(_F32)
        cr = xr - mr
        ci = xi - mi
        inv_std = jax.lax.rsqrt(cr * cr + ci * ci + eps)
        g = gb_ref[0:1, :]
        bb = gb_ref[1:2, :]
        yr_ref[0] = (g * (cr * inv_std) + bb).astype(out_dtype)
        yi_ref[0] = (g * (ci * inv_std)).astype(out_dtype)

    return kernel


# --------------------------------------------------------------------------- wrapper


def complex_layer_norm(x_real, x_imag, gamma=None, beta=None, epsilon=1e-10,
                       *, single_pass_plane_bytes=3 << 20,
                       tile_plane_bytes=2 << 20):
    """ComplexLayerNorm forward.

    x_real / x_imag: (B, ...) real / imaginary planes; normalized over all
    non-batch dims.  gamma / beta: (D,) reals, D = last input dim (None -> 1 / 0,
    matching reset_parameters / affine=False).  Returns (y_real, y_imag) with the
    input shape and dtype.
    """
    orig_shape = tuple(x_real.shape)
    orig_dtype = x_real.dtype
    B = int(orig_shape[0])
    D = int(orig_shape[-1])
    N = 1
    for s in orig_shape[1:]:
        N *= int(s)

    if gamma is None:
        gamma = jnp.ones((D,), _F32)
    if beta is None:
        beta = jnp.zeros((D,), _F32)

    # Row width L: a multiple of 128 lanes AND of D (so gamma/beta tile exactly)
    # that divides N exactly -> zero padding, zero post-kernel slicing. Guarded:
    # if lcm(D, 128) explodes or does not divide N, fall back to the zero-copy
    # (B, N // D, D) layout.
    L = math.lcm(D, 128)
    if L > 16384 or (N % L) != 0:
        L = D
    R = N // L
    inv_n = 1.0 / float(N)
    eps = float(epsilon)
    itemsize = jnp.dtype(orig_dtype).itemsize

    xr3 = x_real.reshape(B, R, L)          # logical reshapes only (no pad/stack)
    xi3 = x_imag.reshape(B, R, L)
    rep = L // D
    gb = jnp.stack([jnp.tile(gamma.astype(_F32).reshape(D), rep),
                    jnp.tile(beta.astype(_F32).reshape(D), rep)], axis=0)   # (2, L)

    out_shape = (jax.ShapeDtypeStruct((B, R, L), orig_dtype),
                 jax.ShapeDtypeStruct((B, R, L), orig_dtype))
    elems = B * R * L
    cost = pl.CostEstimate(flops=14 * elems, transcendentals=elems,
                           bytes_accessed=4 * elems * itemsize + 8 * L)

    plane_bytes = R * L * 4                # f32-equivalent per-batch plane

    # TODO(synk): pathological shapes (huge last dim with only a handful of rows,
    # e.g. D ~ 1e6) would additionally need a lane-split tiling; not handled here.

    if plane_bytes <= int(single_pass_plane_bytes):
        # ---- single pass: whole per-batch slab in VMEM, mean computed in-kernel.
        chunk = _choose_chunk_rows(R, L)
        working = 8 * R * L * itemsize + 6 * chunk * L * 4
        x_spec = pl.BlockSpec((1, R, L), lambda b: (b, 0, 0))
        gb_spec = pl.BlockSpec((2, L), lambda b: (0, 0))
        yr, yi = pl.pallas_call(
            _make_single_pass_kernel(R, L, inv_n, eps, chunk, orig_dtype),
            out_shape=out_shape,
            grid_spec=pltpu.PrefetchScalarGridSpec(
                num_scalar_prefetch=0,
                grid=(B,),
                in_specs=[x_spec, x_spec, gb_spec],
                out_specs=[x_spec, x_spec],
            ),
            compiler_params=_compiler_params(("parallel",), working),
            cost_estimate=cost,
        )(xr3, xi3, gb)
    elif B >= 2:
        # ---- two phases in one pallas_call: phase 0 accumulates the complex sum
        # per batch into SMEM scratch, phase 1 normalizes. No XLA mean prepass.
        TR = _pick_tile_rows(R, max(8, int(tile_plane_bytes) // (L * 4)))
        T = _ceil_div(R, TR)
        working = 8 * TR * L * itemsize + 6 * TR * L * 4
        x_spec = pl.BlockSpec((1, TR, L), lambda b, p, t: (b, t, 0))
        y_spec = pl.BlockSpec((1, TR, L), lambda b, p, t: (b, p * t, 0))
        gb_spec = pl.BlockSpec((2, L), lambda b, p, t: (0, 0))
        yr, yi = pl.pallas_call(
            _make_two_phase_kernel(R, TR, L, inv_n, eps, orig_dtype),
            out_shape=out_shape,
            grid_spec=pltpu.PrefetchScalarGridSpec(
                num_scalar_prefetch=0,
                grid=(B, 2, T),
                in_specs=[x_spec, x_spec, gb_spec],
                out_specs=[y_spec, y_spec],
                scratch_shapes=[pltpu.SMEM((2,), jnp.float32)],
            ),
            compiler_params=_compiler_params(
                ("parallel", "arbitrary", "arbitrary"), working),
            cost_estimate=cost,
        )(xr3, xi3, gb)
    else:
        # ---- B == 1: fully parallel (B, tiles) grid (feeds both v7x cores);
        # per-batch means precomputed and passed as a flat 1-D SMEM array.
        TR = _pick_tile_rows(R, max(8, int(tile_plane_bytes) // (L * 4)))
        T = _ceil_div(R, TR)
        working = 8 * TR * L * itemsize + 6 * TR * L * 4
        mean_r = jnp.mean(xr3, axis=(1, 2), dtype=_F32)
        mean_i = jnp.mean(xi3, axis=(1, 2), dtype=_F32)
        means = jnp.stack([mean_r, mean_i], axis=1).reshape(2 * B)   # (2B,)
        means_spec = pl.BlockSpec(memory_space=pltpu.MemorySpace.SMEM)
        x_spec = pl.BlockSpec((1, TR, L), lambda b, t: (b, t, 0))
        gb_spec = pl.BlockSpec((2, L), lambda b, t: (0, 0))
        yr, yi = pl.pallas_call(
            _make_tiled_mean_kernel(eps, orig_dtype),
            out_shape=out_shape,
            grid_spec=pltpu.PrefetchScalarGridSpec(
                num_scalar_prefetch=0,
                grid=(B, T),
                in_specs=[means_spec, x_spec, x_spec, gb_spec],
                out_specs=[x_spec, x_spec],
            ),
            compiler_params=_compiler_params(("parallel", "parallel"), working),
            cost_estimate=cost,
        )(means, xr3, xi3, gb)

    return yr.reshape(orig_shape), yi.reshape(orig_shape)


# --------------------------------------------------------------------------- reference


def _reference(x_real, x_imag, gamma, beta, epsilon=1e-10):
    """Plain-JAX complex reference mirroring the torch forward."""
    x = x_real.astype(jnp.float32) + 1j * x_imag.astype(jnp.float32)
    dims = tuple(range(1, x.ndim))
    mean = (jnp.mean(x.real, axis=dims, keepdims=True)
            + 1j * jnp.mean(x.imag, axis=dims, keepdims=True))
    xc = x - mean
    std = jnp.sqrt(jnp.abs(xc * jnp.conj(xc)) + epsilon)
    y = (xc.real / std) + 1j * (xc.imag / std)
    return gamma * y + beta            # beta (real) adds to the real part only


# --------------------------------------------------------------------------- tests


if __name__ == "__main__":
    key = jax.random.PRNGKey(0)
    eps = 1e-10
    failures = []

    def run_case(name, subkey, shape, dtype, random_affine, tol, **kw):
        D = shape[-1]
        k1, k2, k3, k4 = jax.random.split(subkey, 4)
        xr = jax.random.normal(k1, shape, dtype=jnp.float32).astype(dtype)
        xi = jax.random.normal(k2, shape, dtype=jnp.float32).astype(dtype)
        if random_affine:
            gamma = jax.random.normal(k3, (D,), dtype=jnp.float32)
            beta = jax.random.normal(k4, (D,), dtype=jnp.float32)
        else:
            gamma = jnp.ones((D,), jnp.float32)    # reset_parameters(): gamma = 1
            beta = jnp.zeros((D,), jnp.float32)    # reset_parameters(): beta = 0
        yr, yi = complex_layer_norm(xr, xi, gamma, beta, epsilon=eps, **kw)
        yr = jax.block_until_ready(yr)
        yi = jax.block_until_ready(yi)
        ref = _reference(xr, xi, gamma, beta, epsilon=eps)
        ok = (yr.shape == shape and yi.shape == shape
              and yr.dtype == dtype and yi.dtype == dtype
              and bool(jnp.allclose(yr.astype(jnp.float32), ref.real, atol=tol, rtol=tol))
              and bool(jnp.allclose(yi.astype(jnp.float32), ref.imag, atol=tol, rtol=tol)))
        if not ok:
            failures.append(name)

    keys = jax.random.split(key, 6)
    # 1) small slab -> single-pass (in-kernel mean), lane-dense L = 128
    run_case("single_pass", keys[0], (2, 8, 32), jnp.float32, False, 1e-5)
    # 2) forced large-slab path, B >= 2 -> fused two-phase (in-kernel mean via SMEM)
    run_case("two_phase", keys[1], (2, 64, 32), jnp.float32, True, 1e-5,
             single_pass_plane_bytes=0, tile_plane_bytes=4096)
    # 3) forced large-slab path, B == 1 -> fully-parallel tiles + wrapper mean
    run_case("b1_parallel", keys[2], (1, 64, 32), jnp.float32, True, 1e-5,
             single_pass_plane_bytes=0, tile_plane_bytes=4096)
    # 4) awkward D (lcm guard) -> zero-copy (B, M, D) fallback layout
    run_case("lcm_fallback", keys[3], (2, 6, 40), jnp.float32, True, 1e-5)
    # 5) bf16 I/O preserved end to end (f32 math inside)
    run_case("bf16_io", keys[4], (2, 8, 128), jnp.bfloat16, True, 5e-2)
    # 6) 4-D input (B, C, S, D), normalized over all non-batch dims
    run_case("four_d", keys[5], (2, 4, 8, 32), jnp.float32, True, 1e-5)

    if failures:
        raise SystemExit("mismatch vs reference: " + ", ".join(failures))
    print("KERNEL_OK")
</pallas_src>

<mosaic_0001>
module attributes {stable_mosaic.version = 11 : i64} {
  func.func @kernel(%arg0: i32, %arg1: memref<1x2x128xf32, #tpu.memory_space<vmem>>, %arg2: memref<1x2x128xf32, #tpu.memory_space<vmem>>, %arg3: memref<2x128xf32, #tpu.memory_space<vmem>>, %arg4: memref<1x2x128xf32, #tpu.memory_space<vmem>>, %arg5: memref<1x2x128xf32, #tpu.memory_space<vmem>>) attributes {dimension_semantics = [#tpu.dimension_semantics<parallel>], iteration_bounds = array<i64: 2>, scalar_prefetch = 0 : i64, scratch_operands = 0 : i64, tpu.core_type = #tpu.core_type<tc>, window_params = [{transform_indices = @transform_0, window_bounds = array<i64: 1, 2, 128>}, {transform_indices = @transform_1, window_bounds = array<i64: 1, 2, 128>}, {pipeline_mode = #tpu.pipeline_mode<synchronous>, transform_indices = @transform_2, window_bounds = array<i64: 2, 128>}, {transform_indices = @transform_3, window_bounds = array<i64: 1, 2, 128>}, {transform_indices = @transform_4, window_bounds = array<i64: 1, 2, 128>}]} {
    %cst = arith.constant 0.000000e+00 : f32
    %cst_0 = arith.constant 0.000000e+00 : f32
    %c0_i32 = arith.constant 0 : i32
    %c2_i32 = arith.constant 2 : i32
    %0 = arith.muli %c0_i32, %c2_i32 : i32
    %1 = tpu.assume_multiple %0, 2 : i32
    %c0 = arith.constant 0 : index
    %2 = arith.index_cast %1 : i32 to index
    %c0_1 = arith.constant 0 : index
    %3 = vector.load %arg1[%c0, %2, %c0_1] : memref<1x2x128xf32, #tpu.memory_space<vmem>>, vector<1x2x128xf32>
    %4 = vector.shape_cast %3 : vector<1x2x128xf32> to vector<2x128xf32>
    %c0_2 = arith.constant 0 : index
    %5 = arith.index_cast %1 : i32 to index
    %c0_3 = arith.constant 0 : index
    %6 = vector.load %arg2[%c0_2, %5, %c0_3] : memref<1x2x128xf32, #tpu.memory_space<vmem>>, vector<1x2x128xf32>
    %7 = vector.shape_cast %6 : vector<1x2x128xf32> to vector<2x128xf32>
    %8 = vector.shape_cast %4 : vector<2x128xf32> to vector<1x2x128xf32>
    %cst_4 = arith.constant dense<0.000000e+00> : vector<1xf32>
    %9 = vector.multi_reduction <add>, %8, %cst_4 [1, 2] : vector<1x2x128xf32> to vector<1xf32>
    %10 = vector.shape_cast %9 : vector<1xf32> to vector<1x1x1xf32>
    %11 = vector.extract %10[0, 0, 0] : f32 from vector<1x1x1xf32>
    %12 = vector.shape_cast %7 : vector<2x128xf32> to vector<1x2x128xf32>
    %cst_5 = arith.constant dense<0.000000e+00> : vector<1xf32>
    %13 = vector.multi_reduction <add>, %12, %cst_5 [1, 2] : vector<1x2x128xf32> to vector<1xf32>
    %14 = vector.shape_cast %13 : vector<1xf32> to vector<1x1x1xf32>
    %15 = vector.extract %14[0, 0, 0] : f32 from vector<1x1x1xf32>
    %16 = arith.addf %cst, %11 : f32
    %17 = arith.addf %cst_0, %15 : f32
    %c1_i32 = arith.constant 1 : i32
    %cst_6 = arith.constant 3.906250e-03 : f32
    %18 = arith.mulf %16, %cst_6 : f32
    %cst_7 = arith.constant 3.906250e-03 : f32
    %19 = arith.mulf %17, %cst_7 : f32
    %c0_8 = arith.constant 0 : index
    %c0_9 = arith.constant 0 : index
    %20 = vector.load %arg3[%c0_8, %c0_9] : memref<2x128xf32, #tpu.memory_space<vmem>>, vector<1x128xf32>
    %c1 = arith.constant 1 : index
    %c0_10 = arith.constant 0 : index
    %21 = vector.load %arg3[%c1, %c0_10] : memref<2x128xf32, #tpu.memory_space<vmem>>, vector<1x128xf32>
    %c0_i32_11 = arith.constant 0 : i32
    %c2_i32_12 = arith.constant 2 : i32
    %22 = arith.muli %c0_i32_11, %c2_i32_12 : i32
    %23 = tpu.assume_multiple %22, 2 : i32
    %c0_13 = arith.constant 0 : index
    %24 = arith.index_cast %23 : i32 to index
    %c0_14 = arith.constant 0 : index
    %25 = vector.load %arg1[%c0_13, %24, %c0_14] : memref<1x2x128xf32, #tpu.memory_space<vmem>>, vector<1x2x128xf32>
    %26 = vector.shape_cast %25 : vector<1x2x128xf32> to vector<2x128xf32>
    %c0_15 = arith.constant 0 : index
    %27 = arith.index_cast %23 : i32 to index
    %c0_16 = arith.constant 0 : index
    %28 = vector.load %arg2[%c0_15, %27, %c0_16] : memref<1x2x128xf32, #tpu.memory_space<vmem>>, vector<1x2x128xf32>
    %29 = vector.shape_cast %28 : vector<1x2x128xf32> to vector<2x128xf32>
    %30 = vector.broadcast %18 : f32 to vector<2x128xf32>
    %31 = arith.subf %26, %30 : vector<2x128xf32>
    %32 = vector.broadcast %19 : f32 to vector<2x128xf32>
    %33 = arith.subf %29, %32 : vector<2x128xf32>
    %34 = arith.mulf %31, %31 : vector<2x128xf32>
    %35 = arith.mulf %33, %33 : vector<2x128xf32>
    %36 = arith.addf %34, %35 : vector<2x128xf32>
    %cst_17 = arith.constant 1.000000e-10 : f32
    %37 = vector.broadcast %cst_17 : f32 to vector<2x128xf32>
    %38 = arith.addf %36, %37 : vector<2x128xf32>
    %39 = math.rsqrt %38 : vector<2x128xf32>
    %40 = arith.mulf %31, %39 : vector<2x128xf32>
    %41 = vector.broadcast %20 : vector<1x128xf32> to vector<2x128xf32>
    %42 = arith.mulf %41, %40 : vector<2x128xf32>
    %43 = vector.broadcast %21 : vector<1x128xf32> to vector<2x128xf32>
    %44 = arith.addf %42, %43 : vector<2x128xf32>
    %c0_18 = arith.constant 0 : index
    %45 = arith.index_cast %23 : i32 to index
    %c0_19 = arith.constant 0 : index
    %46 = vector.load %arg4[%c0_18, %45, %c0_19] : memref<1x2x128xf32, #tpu.memory_space<vmem>>, vector<1x2x128xf32>
    %47 = vector.shape_cast %46 : vector<1x2x128xf32> to vector<2x128xf32>
    %48 = vector.shape_cast %44 : vector<2x128xf32> to vector<1x2x128xf32>
    tpu.vector_store %arg4[%c0_18, %45, %c0_19], %48 {strides = array<i32>} : memref<1x2x128xf32, #tpu.memory_space<vmem>>, vector<1x2x128xf32>,
    %49 = arith.mulf %33, %39 : vector<2x128xf32>
    %50 = vector.broadcast %20 : vector<1x128xf32> to vector<2x128xf32>
    %51 = arith.mulf %50, %49 : vector<2x128xf32>
    %c0_20 = arith.constant 0 : index
    %52 = arith.index_cast %23 : i32 to index
    %c0_21 = arith.constant 0 : index
    %53 = vector.load %arg5[%c0_20, %52, %c0_21] : memref<1x2x128xf32, #tpu.memory_space<vmem>>, vector<1x2x128xf32>
    %54 = vector.shape_cast %53 : vector<1x2x128xf32> to vector<2x128xf32>
    %55 = vector.shape_cast %51 : vector<2x128xf32> to vector<1x2x128xf32>
    tpu.vector_store %arg5[%c0_20, %52, %c0_21], %55 {strides = array<i32>} : memref<1x2x128xf32, #tpu.memory_space<vmem>>, vector<1x2x128xf32>,
    %c1_i32_22 = arith.constant 1 : i32
    return
  }
  func.func @transform_0(%arg0: i32) -> (i32, i32, i32) {
    %c0_i32 = arith.constant 0 : i32
    %c0_i32_0 = arith.constant 0 : i32
    %c0_i32_1 = arith.constant 0 : i32
    return %arg0, %c0_i32, %c0_i32_0 : i32, i32, i32
  }
  func.func @transform_1(%arg0: i32) -> (i32, i32, i32) {
    %c0_i32 = arith.constant 0 : i32
    %c0_i32_0 = arith.constant 0 : i32
    %c0_i32_1 = arith.constant 0 : i32
    return %arg0, %c0_i32, %c0_i32_0 : i32, i32, i32
  }
  func.func @transform_2(%arg0: i32) -> (i32, i32) {
    %c0_i32 = arith.constant 0 : i32
    %c0_i32_0 = arith.constant 0 : i32
    %c0_i32_1 = arith.constant 0 : i32
    return %c0_i32, %c0_i32_0 : i32, i32
  }
  func.func @transform_3(%arg0: i32) -> (i32, i32, i32) {
    %c0_i32 = arith.constant 0 : i32
    %c0_i32_0 = arith.constant 0 : i32
    %c0_i32_1 = arith.constant 0 : i32
    return %arg0, %c0_i32, %c0_i32_0 : i32, i32, i32
  }
  func.func @transform_4(%arg0: i32) -> (i32, i32, i32) {
    %c0_i32 = arith.constant 0 : i32
    %c0_i32_0 = arith.constant 0 : i32
    %c0_i32_1 = arith.constant 0 : i32
    return %arg0, %c0_i32, %c0_i32_0 : i32, i32, i32
  }
}

</mosaic_0001>

<llo_original>
// kernel: tpu_custom_call.1
$region0: #{tpu_custom_call.1}
  #allocation0 [shape = 'u32[]', space=smem, size = 0x4, offset = 0x4, fixed_abs, tag = 'smem constant byte address 0x4 - core index']
  #allocation1 [shape = 'u32[144,128]{1,0:T(1,128)}', space=vmem, size = 0x12000, scoped, tag = 'internal scratch']
  %s0 = inlined_call_operand.hbm [shape: f32[2,2,128], index: 0, kind: input, shape index: {}]
  %s1 = inlined_call_operand.hbm [shape: f32[2,2,128], index: 1, kind: input, shape index: {}]
  %s2 = inlined_call_operand.vmem [shape: f32[2,128], index: 2, kind: input, shape index: {}]
  %s3 = inlined_call_operand.hbm [shape: f32[2,2,128], index: 3, kind: output, shape index: {0}]
  %s4 = inlined_call_operand.hbm [shape: f32[2,2,128], index: 4, kind: output, shape index: {1}]
  %5 = xla_tuple %s3, %s4
  %s6 = sld [smem:[#allocation0]]
  $region61: #{tpu_custom_call.1} parent=0
    _
  %s8 = ssub.s32 1, %s6
  %s9 = scalar_select 0, %s8, %s6
  $region1: #{tpu_custom_call.1} parent=0
    #allocation2 [shape = 'u8[2048]{0}', space=vmem, size = 0x800, scoped, tag = 'input window, operand 0']
    #allocation3 [shape = 's32[2]{0}', space=sflag, size = 0x8, scoped, tag = 'scoped memory for tpu_custom_call.1']
    #allocation4 [shape = 's32[2]{0}', space=sflag, size = 0x8, scoped, tag = 'scoped memory for tpu_custom_call.1']
    #allocation5 [shape = 'u8[2048]{0}', space=vmem, size = 0x800, scoped, tag = 'input window, operand 1']
    #allocation6 [shape = 's32[2]{0}', space=sflag, size = 0x8, scoped, tag = 'scoped memory for tpu_custom_call.1']
    #allocation7 [shape = 'u8[2048]{0}', space=vmem, size = 0x800, scoped, tag = 'output window, operand 0']
    #allocation8 [shape = 'u8[2048]{0}', space=vmem, size = 0x800, scoped, tag = 'output window, operand 1']
    #allocation9 [shape = 's32[2]{0}', space=sflag, size = 0x8, scoped, tag = 'scoped memory for tpu_custom_call.1']
    %10 = vsyncpa [#allocation3], 0
    %s11 = scalar_lea.sflag [#allocation3], 1
    %12 = vsyncpa %s11, 0
    %13 = vsyncpa [#allocation6], 0
    %s14 = scalar_lea.sflag [#allocation6], 1
    %15 = vsyncpa %s14, 0
    %16 = vsyncpa [#allocation4], 0
    %s17 = scalar_lea.sflag [#allocation4], 1
    %18 = vsyncpa %s17, 0
    %19 = vsyncpa [#allocation9], 0
    %s20 = scalar_lea.sflag [#allocation9], 1
    %21 = vsyncpa %s20, 0
    loop: start=0, step=1, limit=4
    $region2: #{tpu_custom_call.1} parent=1 // loop_pre_header
      _
    $region3: #{tpu_custom_call.1} parent=1 // loop_header
      %s23 = sphi 0, %s27
      %p24 = scmp.ge.s32.totalorder %s23, 4
      %s33 = sphi 0, %s35
      %s36 = sphi 0, %s33
      %s37 = sphi 0, %s36
      %s53 = sphi 0, %s37
      %s59 = sphi 0, %s61
      %s62 = sphi 0, %s59
      %s63 = sphi 0, %s62
      %s79 = sphi 0, %s63
      %s83 = sphi 0, %s83
      %s85 = sphi 0, %s83
      %s86 = sphi 0, %s85
      %s100 = sphi 0, %s86
      %s106 = sphi 0, %s108
      %s109 = sphi 0, %s106
      %s110 = sphi 0, %s109
      %s126 = sphi 0, %s110
      %s132 = sphi 0, %s134
      %s135 = sphi 0, %s132
      %s136 = sphi 0, %s135
      %s152 = sphi 0, %s136
    $region4: #{tpu_custom_call.1} parent=1 // loop_header_branch
      %26 = sbr.rel (%p24) target = $region8
    $region5: #{tpu_custom_call.1} parent=1 // loop_body
      %s28 = ssub.s32 %s23, 1
      %s29 = ssub.s32 %s23, 2
      %s30 = sadd.s32 %s23, 1
      %s31 = ssub.s32 %s23, %s30
      %p32 = scmp.eq.s32.totalorder %s31, 0
      %s34 = sadd.s32 %s33, 1
      %s35 = scalar_select %p32, %s33, %s34
      %p38 = pneg %p32
      %p39 = scmp.eq.s32.totalorder %s23, 1
      %p40 = por %p38, %p39
      %p41 = scmp.ne.s32.totalorder %s33, %s36
      %p42 = scmp.eq.s32.totalorder %s23, 0
      %p43 = por %p41, %p42
      %p44 = scmp.ne.s32.totalorder %s33, %s36
      %p45 = scmp.eq.s32.totalorder %s28, 1
      %p46 = por %p44, %p45
      %p47 = scmp.ne.s32.totalorder %s36, %s37
      %p48 = scmp.eq.s32.totalorder %s28, 0
      %p49 = por %p47, %p48
      %p50 = scmp.ne.s32.totalorder %s36, %s37
      %p51 = scmp.eq.s32.totalorder %s29, 1
      %p52 = por %p50, %p51
      %p54 = scmp.ne.s32.totalorder %s37, %s53
      %p55 = scmp.eq.s32.totalorder %s29, 0
      %p56 = por %p54, %p55
      %s57 = ssub.s32 %s23, %s30
      %p58 = scmp.eq.s32.totalorder %s57, 0
      %s60 = sadd.s32 %s59, 1
      %s61 = scalar_select %p58, %s59, %s60
      %p64 = pneg %p58
      %p65 = scmp.eq.s32.totalorder %s23, 1
      %p66 = por %p64, %p65
      %p67 = scmp.ne.s32.totalorder %s59, %s62
      %p68 = scmp.eq.s32.totalorder %s23, 0
      %p69 = por %p67, %p68
      %p70 = scmp.ne.s32.totalorder %s59, %s62
      %p71 = scmp.eq.s32.totalorder %s28, 1
      %p72 = por %p70, %p71
      %p73 = scmp.ne.s32.totalorder %s62, %s63
      %p74 = scmp.eq.s32.totalorder %s28, 0
      %p75 = por %p73, %p74
      %p76 = scmp.ne.s32.totalorder %s62, %s63
      %p77 = scmp.eq.s32.totalorder %s29, 1
      %p78 = por %p76, %p77
      %p80 = scmp.ne.s32.totalorder %s63, %s79
      %p81 = scmp.eq.s32.totalorder %s29, 0
      %p82 = por %p80, %p81
      %s84 = sadd.s32 %s83, 1
      %p87 = scmp.eq.s32.totalorder %s23, 1
      %p88 = scmp.ne.s32.totalorder %s83, %s85
      %p89 = scmp.eq.s32.totalorder %s23, 0
      %p90 = por %p88, %p89
      %p91 = scmp.ne.s32.totalorder %s83, %s85
      %p92 = scmp.eq.s32.totalorder %s28, 1
      %p93 = por %p91, %p92
      %p94 = scmp.ne.s32.totalorder %s85, %s86
      %p95 = scmp.eq.s32.totalorder %s28, 0
      %p96 = por %p94, %p95
      %p97 = scmp.ne.s32.totalorder %s85, %s86
      %p98 = scmp.eq.s32.totalorder %s29, 1
      %p99 = por %p97, %p98
      %p101 = scmp.ne.s32.totalorder %s86, %s100
      %p102 = scmp.eq.s32.totalorder %s29, 0
      %p103 = por %p101, %p102
      %s104 = ssub.s32 %s23, %s30
      %p105 = scmp.eq.s32.totalorder %s104, 0
      %s107 = sadd.s32 %s106, 1
      %s108 = scalar_select %p105, %s106, %s107
      %p111 = pneg %p105
      %p112 = scmp.eq.s32.totalorder %s23, 1
      %p113 = por %p111, %p112
      %p114 = scmp.ne.s32.totalorder %s106, %s109
      %p115 = scmp.eq.s32.totalorder %s23, 0
      %p116 = por %p114, %p115
      %p117 = scmp.ne.s32.totalorder %s106, %s109
      %p118 = scmp.eq.s32.totalorder %s28, 1
      %p119 = por %p117, %p118
      %p120 = scmp.ne.s32.totalorder %s109, %s110
      %p121 = scmp.eq.s32.totalorder %s28, 0
      %p122 = por %p120, %p121
      %p123 = scmp.ne.s32.totalorder %s109, %s110
      %p124 = scmp.eq.s32.totalorder %s29, 1
      %p125 = por %p123, %p124
      %p127 = scmp.ne.s32.totalorder %s110, %s126
      %p128 = scmp.eq.s32.totalorder %s29, 0
      %p129 = por %p127, %p128
      %s130 = ssub.s32 %s23, %s30
      %p131 = scmp.eq.s32.totalorder %s130, 0
      %s133 = sadd.s32 %s132, 1
      %s134 = scalar_select %p131, %s132, %s133
      %p137 = pneg %p131
      %p138 = scmp.eq.s32.totalorder %s23, 1
      %p139 = por %p137, %p138
      %p140 = scmp.ne.s32.totalorder %s132, %s135
      %p141 = scmp.eq.s32.totalorder %s23, 0
      %p142 = por %p140, %p141
      %p143 = scmp.ne.s32.totalorder %s132, %s135
      %p144 = scmp.eq.s32.totalorder %s28, 1
      %p145 = por %p143, %p144
      %p146 = scmp.ne.s32.totalorder %s135, %s136
      %p147 = scmp.eq.s32.totalorder %s28, 0
      %p148 = por %p146, %p147
      %p149 = scmp.ne.s32.totalorder %s135, %s136
      %p150 = scmp.eq.s32.totalorder %s29, 1
      %p151 = por %p149, %p150
      %p153 = scmp.ne.s32.totalorder %s136, %s152
      %p154 = scmp.eq.s32.totalorder %s29, 0
      %p155 = por %p153, %p154
      %p156 = scmp.le.s32.totalorder 1, %s23
      %p157 = scmp.lt.s32.totalorder %s23, 3
      %p158 = pnand %p156, %p157
      %p159 = pneg %p158
      // Predicated region
      $region9: #{tpu_custom_call.1} parent=5 // pred_check
        _
      $region10: #{tpu_custom_call.1} parent=5 // pred_check_branch
        %161 = sbr.rel (%p158) target = $region12
      $region11: #{tpu_custom_call.1} parent=5 // pred_region
        %s162 = ssub.s32 %s23, 1
        // Predicated region
        $region13: #{tpu_custom_call.1} parent=11 // pred_check
          %p163 = pneg %p96
        $region14: #{tpu_custom_call.1} parent=11 // pred_check_branch
          %165 = sbr.rel (%p163) target = $region16
        $region15: #{tpu_custom_call.1} parent=11 // pred_region
          _
        $region16: #{tpu_custom_call.1} parent=11 // pred_fallthru
          _
      $region12: #{tpu_custom_call.1} parent=5 // pred_fallthru
        _
      %p166 = scmp.lt.s32.totalorder %s23, 2
      // Predicated region
      $region17: #{tpu_custom_call.1} parent=5 // pred_check
        %p167 = pneg %p166
      $region18: #{tpu_custom_call.1} parent=5 // pred_check_branch
        %169 = sbr.rel (%p167) target = $region20
      $region19: #{tpu_custom_call.1} parent=5 // pred_region
        // Predicated region
        $region21: #{tpu_custom_call.1} parent=19 // pred_check
          %p170 = pneg %p43
        $region22: #{tpu_custom_call.1} parent=19 // pred_check_branch
          %172 = sbr.rel (%p170) target = $region24
        $region23: #{tpu_custom_call.1} parent=19 // pred_region
          %s173 = sand.u32 %s33, 1
          %s174 = scalar_lea.sflag [#allocation3], %s173
          %s175 = sand.u32 %s33, 1
          %s176 = smul.addr %s175, 2
          %s177 = scalar_lea.vmem [#allocation2], %s176
          %s179 = ssub.s32 32, 32
          %180 = vsyncadd %s174, %s179
          %s181 = smul.addr %s23, 32
          %s182 = scalar_lea.hbm %s0, %s181
          %s184 = sshll.u32 %s177, 4
          %s185 = int_to_ptr.vmem [resolvable:$true] %s184
          %187 = dma.hbm_to_vmem [thread:$0]  %s182, 32, %s185, %s174
        $region24: #{tpu_custom_call.1} parent=19 // pred_fallthru
          _
        // Predicated region
        $region25: #{tpu_custom_call.1} parent=19 // pred_check
          %p188 = pneg %p69
        $region26: #{tpu_custom_call.1} parent=19 // pred_check_branch
          %190 = sbr.rel (%p188) target = $region28
        $region27: #{tpu_custom_call.1} parent=19 // pred_region
          %s191 = sand.u32 %s59, 1
          %s192 = scalar_lea.sflag [#allocation6], %s191
          %s193 = sand.u32 %s59, 1
          %s194 = smul.addr %s193, 2
          %s195 = scalar_lea.vmem [#allocation5], %s194
          %s197 = ssub.s32 32, 32
          %198 = vsyncadd %s192, %s197
          %s199 = smul.addr %s23, 32
          %s200 = scalar_lea.hbm %s1, %s199
          %s202 = sshll.u32 %s195, 4
          %s203 = int_to_ptr.vmem [resolvable:$true] %s202
          %205 = dma.hbm_to_vmem [thread:$0]  %s200, 32, %s203, %s192
        $region28: #{tpu_custom_call.1} parent=19 // pred_fallthru
          _
      $region20: #{tpu_custom_call.1} parent=5 // pred_fallthru
        _
      %p206 = scmp.le.s32.totalorder 1, %s23
      %p207 = scmp.lt.s32.totalorder %s23, 3
      %p208 = pnand %p206, %p207
      %p209 = pneg %p208
      // Predicated region
      $region29: #{tpu_custom_call.1} parent=5 // pred_check
        _
      $region30: #{tpu_custom_call.1} parent=5 // pred_check_branch
        %211 = sbr.rel (%p208) target = $region32
      $region31: #{tpu_custom_call.1} parent=5 // pred_region
        %s212 = ssub.s32 %s23, 1
        %s213 = sand.u32 %s36, 1
        %s214 = scalar_lea.sflag [#allocation3], %s213
        %s215 = sand.u32 %s36, 1
        %s216 = smul.addr %s215, 2
        %s217 = scalar_lea.vmem [#allocation2], %s216
        // Predicated region
        $region33: #{tpu_custom_call.1} parent=31 // pred_check
          %p218 = pneg %p49
        $region34: #{tpu_custom_call.1} parent=31 // pred_check_branch
          %220 = sbr.rel (%p218) target = $region36
        $region35: #{tpu_custom_call.1} parent=31 // pred_region
          %221 = dma.done %s214, 32
        $region36: #{tpu_custom_call.1} parent=31 // pred_fallthru
          _
        %s222 = sand.u32 %s62, 1
        %s223 = scalar_lea.sflag [#allocation6], %s222
        %s224 = sand.u32 %s62, 1
        %s225 = smul.addr %s224, 2
        %s226 = scalar_lea.vmem [#allocation5], %s225
        // Predicated region
        $region37: #{tpu_custom_call.1} parent=31 // pred_check
          %p227 = pneg %p75
        $region38: #{tpu_custom_call.1} parent=31 // pred_check_branch
          %229 = sbr.rel (%p227) target = $region40
        $region39: #{tpu_custom_call.1} parent=31 // pred_region
          %230 = dma.done %s223, 32
        $region40: #{tpu_custom_call.1} parent=31 // pred_fallthru
          _
        %s231 = sand.u32 %s36, 1
        %s232 = scalar_lea.sflag [#allocation3], %s231
        %s233 = sand.u32 %s36, 1
        %s234 = smul.addr %s233, 2
        %s235 = scalar_lea.vmem [#allocation2], %s234
        %p236 = pneg %p49
        %p237 = pneg %p46
        %s238 = sand.u32 %s62, 1
        %s239 = scalar_lea.sflag [#allocation6], %s238
        %s240 = sand.u32 %s62, 1
        %s241 = smul.addr %s240, 2
        %s242 = scalar_lea.vmem [#allocation5], %s241
        %p243 = pneg %p75
        %p244 = pneg %p72
        %p245 = pneg %p96
        %p246 = pneg %p93
        %p247 = pneg %p122
        %p248 = pneg %p119
        %s249 = sand.u32 %s109, 1
        %s250 = scalar_lea.sflag [#allocation4], %s249
        %s251 = sand.u32 %s109, 1
        %s252 = smul.addr %s251, 2
        %s253 = scalar_lea.vmem [#allocation7], %s252
        %p254 = pneg %p148
        %p255 = pneg %p145
        %s256 = sand.u32 %s135, 1
        %s257 = scalar_lea.sflag [#allocation9], %s256
        %s258 = sand.u32 %s135, 1
        %s259 = smul.addr %s258, 2
        %s260 = scalar_lea.vmem [#allocation8], %s259
        %v261 = vld [vmem:[%s217] sm:$0x3]
        %v262 = vld [vmem:[%s226] sm:$0x3]
        %vm263 = vcmask 1041408
        %v264 = vsel %vm263, %v261, 0.0
        %265 = vadd.xlane.f32.xlu0 %v264
        %v266 = vpop.xlane.xlu0 %265
        %v267 = vrot.slane %v266, 4
        %v268 = vadd.f32 %v266, %v267
        %v269 = vrot.slane %v268, 2
        %v270 = vadd.f32 %v268, %v269
        %v271 = vrot.slane %v270, 1
        %v272 = vadd.f32 %v270, %v271
        %s273 = vtos %v272
        %v274 = vsel %vm263, %v262, 0.0
        %275 = vadd.xlane.f32.xlu0 %v274
        %v276 = vpop.xlane.xlu0 %275
        %v277 = vrot.slane %v276, 4
        %v278 = vadd.f32 %v276, %v277
        %v279 = vrot.slane %v278, 2
        %v280 = vadd.f32 %v278, %v279
        %v281 = vrot.slane %v280, 1
        %v282 = vadd.f32 %v280, %v281
        %s283 = vtos %v282
        %s284 = sadd.f32 %s273, 0.0
        %s285 = sadd.f32 %s283, 0.0
        %s286 = smul.f32 %s284, 0.00390625
        %s287 = smul.f32 %s285, 0.00390625
        %v288 = vld [vmem:[%s2] sm:$0x1]
        %v289 = vld [vmem:[%s2 + $0x1] sm:$0x1]
        %v290 = vstv %s286
        %v291 = vsub.f32 %v261, %v290
        %v292 = vstv %s287
        %v293 = vsub.f32 %v262, %v292
        %v294 = vmul.f32 %v291, %v291
        %v295 = vmul.f32 %v293, %v293
        %v296 = vadd.f32 %v294, %v295
        %v297 = vadd.f32 %v296, 1e-10
        %v298 = vrsqrt.pop %v297
        %v299 = vmul.f32 %v291, %v298
        %v300 = vlaneseq
        %v301 = vshrl.u32 %v300, 7
        %v302 = vsub.s32 0, %v301
        %v303 = vrot.slane %v288, %v302
        %v304 = vmul.f32 %v303, %v299
        %v305 = vlaneseq
        %v306 = vshrl.u32 %v305, 7
        %v307 = vsub.s32 0, %v306
        %v308 = vrot.slane %v289, %v307
        %v309 = vadd.f32 %v304, %v308
        %310 = vst [vmem:[%s253] sm:$0x3] %v309
        %v311 = vmul.f32 %v293, %v298
        %v312 = vmul.f32 %v303, %v311
        %313 = vst [vmem:[%s260] sm:$0x3] %v312
        %s314 = sand.u32 %s109, 1
        %s315 = scalar_lea.sflag [#allocation4], %s314
        %s316 = sand.u32 %s109, 1
        %s317 = smul.addr %s316, 2
        %s318 = scalar_lea.vmem [#allocation7], %s317
        %s319 = sand.u32 %s135, 1
        %s320 = scalar_lea.sflag [#allocation9], %s319
        %s321 = sand.u32 %s135, 1
        %s322 = smul.addr %s321, 2
        %s323 = scalar_lea.vmem [#allocation8], %s322
        // Predicated region
        $region41: #{tpu_custom_call.1} parent=31 // pred_check
          %p324 = pneg %p119
        $region42: #{tpu_custom_call.1} parent=31 // pred_check_branch
          %326 = sbr.rel (%p324) target = $region44
        $region43: #{tpu_custom_call.1} parent=31 // pred_region
          %s328 = ssub.s32 32, 32
          %329 = vsyncadd %s315, %s328
          %s330 = smul.addr %s28, 32
          %s331 = scalar_lea.hbm %s3, %s330
          %s333 = sshll.u32 %s318, 4
          %s334 = int_to_ptr.vmem [resolvable:$true] %s333
          %336 = dma.vmem_to_hbm [thread:$0]  %s334, 32, %s331, %s315
        $region44: #{tpu_custom_call.1} parent=31 // pred_fallthru
          _
        // Predicated region
        $region45: #{tpu_custom_call.1} parent=31 // pred_check
          %p337 = pneg %p145
        $region46: #{tpu_custom_call.1} parent=31 // pred_check_branch
          %339 = sbr.rel (%p337) target = $region48
        $region47: #{tpu_custom_call.1} parent=31 // pred_region
          %s341 = ssub.s32 32, 32
          %342 = vsyncadd %s320, %s341
          %s343 = smul.addr %s28, 32
          %s344 = scalar_lea.hbm %s4, %s343
          %s346 = sshll.u32 %s323, 4
          %s347 = int_to_ptr.vmem [resolvable:$true] %s346
          %349 = dma.vmem_to_hbm [thread:$0]  %s347, 32, %s344, %s320
        $region48: #{tpu_custom_call.1} parent=31 // pred_fallthru
          _
      $region32: #{tpu_custom_call.1} parent=5 // pred_fallthru
        _
      %p350 = scmp.le.s32.totalorder 2, %s23
      // Predicated region
      $region49: #{tpu_custom_call.1} parent=5 // pred_check
        %p351 = pneg %p350
      $region50: #{tpu_custom_call.1} parent=5 // pred_check_branch
        %353 = sbr.rel (%p351) target = $region52
      $region51: #{tpu_custom_call.1} parent=5 // pred_region
        %s354 = ssub.s32 %s23, 2
        // Predicated region
        $region53: #{tpu_custom_call.1} parent=51 // pred_check
          %p355 = pneg %p125
        $region54: #{tpu_custom_call.1} parent=51 // pred_check_branch
          %357 = sbr.rel (%p355) target = $region56
        $region55: #{tpu_custom_call.1} parent=51 // pred_region
          %s358 = sand.u32 %s110, 1
          %s359 = scalar_lea.sflag [#allocation4], %s358
          %s360 = sand.u32 %s110, 1
          %s361 = smul.addr %s360, 2
          %s362 = scalar_lea.vmem [#allocation7], %s361
          %363 = dma.done %s359, 32
        $region56: #{tpu_custom_call.1} parent=51 // pred_fallthru
          _
        // Predicated region
        $region57: #{tpu_custom_call.1} parent=51 // pred_check
          %p364 = pneg %p151
        $region58: #{tpu_custom_call.1} parent=51 // pred_check_branch
          %366 = sbr.rel (%p364) target = $region60
        $region59: #{tpu_custom_call.1} parent=51 // pred_region
          %s367 = sand.u32 %s136, 1
          %s368 = scalar_lea.sflag [#allocation9], %s367
          %s369 = sand.u32 %s136, 1
          %s370 = smul.addr %s369, 2
          %s371 = scalar_lea.vmem [#allocation8], %s370
          %372 = dma.done %s368, 32
        $region60: #{tpu_custom_call.1} parent=51 // pred_fallthru
          _
      $region52: #{tpu_custom_call.1} parent=5 // pred_fallthru
        _
    $region6: #{tpu_custom_call.1} parent=1 // loop_footer
      %s27 = sadd.s32 1, %s23
    $region7: #{tpu_custom_call.1} parent=1 // loop_footer_branch
      %22 = sbr.rel target = $region3
    $region8: #{tpu_custom_call.1} parent=1 // loop_exit
      _
    %373 = vsyncpa [#allocation3], 1
    %s374 = scalar_lea.sflag [#allocation3], 1
    %375 = vsyncpa %s374, 1
    %376 = vsyncpa [#allocation6], 1
    %s377 = scalar_lea.sflag [#allocation6], 1
    %378 = vsyncpa %s377, 1
    %379 = vsyncpa [#allocation4], 1
    %s380 = scalar_lea.sflag [#allocation4], 1
    %381 = vsyncpa %s380, 1
    %382 = vsyncpa [#allocation9], 1
    %s383 = scalar_lea.sflag [#allocation9], 1
    %384 = vsyncpa %s383, 1

</llo_original>
